<compile_context>
chip_gen: v5e
topology: v5e:2x2
jax: 0.10.0
libtpu: 0.0.40
codegen_flags: <defaults>
</compile_context>

<pallas_src>
import jax
import jax.numpy as jnp
from jax.experimental import pallas as pl
from jax.experimental.pallas import tpu as pltpu


# --------------------------------- kernel -----------------------------------
def _locked_dropout_kernel(x_ref, mask_ref, o_ref):
    # x_ref : (t_blk, lane_blk)  native dtype (f32 / bf16 / ...)
    # mask  : (1,     lane_blk)  float32, values in {0, 1/(1-p)}
    # Product computed in f32 (exact 1/(1-p) scale), rounded once to o dtype.
    # The HBM data path for x / o stays in the native dtype.
    o_ref[...] = (x_ref[...] * mask_ref[...]).astype(o_ref.dtype)


def _round_down(v, m):
    return (v // m) * m


# --------------------------------- wrapper ----------------------------------
def recurrent_dropout(x, seed, p, locked=True, force_pallas=False):
    """Locked (variational) dropout over x of shape (seq, batch, hidden):
    one Bernoulli(1-p) mask of shape (batch, hidden), scaled by 1/(1-p),
    applied identically at every time step."""
    assert locked, "only locked=True is supported (matches the module)"
    T, B, H = x.shape
    p = float(p)

    # Degenerate rates bypass everything.
    if p <= 0.0:
        return x
    if p >= 1.0:
        return jnp.zeros_like(x)

    # One-time mask (plain JAX PRNG, outside the kernel).  Kept in f32 so the
    # 1/(1-p) scale is exact; the single rounding to x.dtype happens on the
    # product (inside the kernel / the fused XLA multiply).
    key = jax.random.PRNGKey(seed)
    keep = jax.random.bernoulli(key, 1.0 - p, (B, H))
    mask_f32 = keep.astype(jnp.float32) * jnp.float32(1.0 / (1.0 - p))

    BH = B * H
    itemsize = jnp.dtype(x.dtype).itemsize
    total_bytes = T * BH * itemsize
    lane_dense = (BH % 128) == 0

    # Small or non-lane-dense inputs: fused XLA broadcast-multiply is at least
    # as fast as a grid=(1,) pallas_call and needs no double-buffer VMEM.
    SMALL_BYTES = 4 * 1024 * 1024
    use_pallas = lane_dense and (force_pallas or total_bytes > SMALL_BYTES)
    if not use_pallas:
        return (x * mask_f32[None]).astype(x.dtype)

    # -------------------- Pallas path: lane-dense streaming -----------------
    x2d = x.reshape(T, BH)
    mask2d = mask_f32.reshape(1, BH)

    # dtype-aware sublane multiple: 8 for f32, 16 for bf16, 32 for int8/fp8.
    sub = 8 * max(1, 4 // itemsize)

    # Lane block: multiple of 128, capped so a block stays bounded even for
    # huge B*H (keeps double-buffered in+out well inside v7x's VMEM).
    LANE_CAP = 512 * 128                         # 65536 lanes
    lane_blk = min(BH, LANE_CAP)
    n_lane = pl.cdiv(BH, lane_blk)

    # Time block: multiple of `sub`, sized to ~4 MiB per block.  Input+output
    # double-buffered -> ~16 MiB, under the explicit 32 MiB limit below.
    TARGET_BLOCK_BYTES = 4 * 1024 * 1024
    row_bytes = lane_blk * itemsize
    t_blk = max(sub, _round_down(TARGET_BLOCK_BYTES // row_bytes, sub))
    if t_blk >= T:
        t_blk = T                                # full-extent block is legal
    n_t = pl.cdiv(T, t_blk)

    # v7x megacore: prefer >=2 independent blocks so both TCs stream HBM.
    if n_t * n_lane == 1 and T >= 2 * sub:
        t_blk = max(sub, _round_down(T // 2, sub))
        n_t = pl.cdiv(T, t_blk)

    def _launch(mask_spec):
        return pl.pallas_call(
            _locked_dropout_kernel,
            out_shape=jax.ShapeDtypeStruct((T, BH), x.dtype),
            grid=(n_t, n_lane),
            in_specs=[
                pl.BlockSpec((t_blk, lane_blk), lambda i, j: (i, j)),
                mask_spec,
            ],
            out_specs=pl.BlockSpec((t_blk, lane_blk), lambda i, j: (i, j)),
            compiler_params=pltpu.CompilerParams(
                dimension_semantics=("parallel", "parallel"),
                vmem_limit_bytes=32 * 1024 * 1024,
            ),
        )(x2d, mask2d)

    try:
        # The mask block never changes with the time index -> single-buffer it
        # (frees a little VMEM budget for the x/out blocks).
        out2d = _launch(pl.BlockSpec((1, lane_blk), lambda i, j: (0, j),
                                     pipeline_mode=pl.Buffered(1)))
    except Exception:
        # Fallback for environments without pipeline_mode / Buffered(1).
        out2d = _launch(pl.BlockSpec((1, lane_blk), lambda i, j: (0, j)))

    return out2d.reshape(T, B, H)


# ----------------------------------- test ------------------------------------
if __name__ == "__main__":
    p = 0.3
    scale = 1.0 / (1.0 - p)

    def reference(x, seed):
        _, B, H = x.shape
        keep = jax.random.bernoulli(jax.random.PRNGKey(seed), 1.0 - p, (B, H))
        return (x.astype(jnp.float32) * keep.astype(jnp.float32)[None] * scale
                ).astype(x.dtype)

    key = jax.random.PRNGKey(0)
    k1, k2, k3 = jax.random.split(key, 3)

    # 1) Pallas kernel path (lane-dense: B*H = 256 is a multiple of 128).
    T, B, H = 8, 2, 128
    x = jax.random.normal(k1, (T, B, H), dtype=jnp.float32)
    out = jax.block_until_ready(
        recurrent_dropout(x, seed=1234, p=p, force_pallas=True))
    assert out.shape == x.shape and out.dtype == x.dtype
    assert bool(jnp.allclose(out, reference(x, 1234), atol=1e-6))
    # locked semantics: identical per-(batch, hidden) scaling at every step
    r_first = out[0] / jnp.where(x[0] == 0, 1.0, x[0])
    r_last = out[-1] / jnp.where(x[-1] == 0, 1.0, x[-1])
    assert bool(jnp.allclose(r_first, r_last, atol=1e-5))

    # 2) bf16 Pallas path (exercises dtype-aware sublane rounding, sub=16).
    xb = jax.random.normal(k2, (32, 2, 128), dtype=jnp.bfloat16)
    outb = jax.block_until_ready(
        recurrent_dropout(xb, seed=7, p=p, force_pallas=True))
    assert outb.dtype == jnp.bfloat16
    assert bool(jnp.allclose(outb.astype(jnp.float32),
                             reference(xb, 7).astype(jnp.float32),
                             atol=1e-2, rtol=1e-2))

    # 3) small / non-lane-dense auto path (spec-implied small shape) + p=0.
    xs = jax.random.normal(k3, (8, 2, 32), dtype=jnp.float32)
    outs = jax.block_until_ready(recurrent_dropout(xs, seed=3, p=p))
    assert bool(jnp.allclose(outs, reference(xs, 3), atol=1e-6))
    out0 = jax.block_until_ready(recurrent_dropout(xs, seed=3, p=0.0))
    assert bool(jnp.array_equal(out0, xs))

    print("KERNEL_OK")
</pallas_src>

<mosaic_0001>
module attributes {stable_mosaic.version = 11 : i64} {
  func.func @_locked_dropout_kernel(%arg0: i32, %arg1: i32, %arg2: memref<8x256xf32, #tpu.memory_space<vmem>>, %arg3: memref<1x256xf32, #tpu.memory_space<vmem>>, %arg4: memref<8x256xf32, #tpu.memory_space<vmem>>) attributes {dimension_semantics = [#tpu.dimension_semantics<parallel>, #tpu.dimension_semantics<parallel>], iteration_bounds = array<i64: 1, 1>, scalar_prefetch = 0 : i64, scratch_operands = 0 : i64, tpu.core_type = #tpu.core_type<tc>, window_params = [{transform_indices = @transform_0, window_bounds = array<i64: 8, 256>}, {pipeline_mode = #tpu.pipeline_mode<synchronous>, transform_indices = @transform_1, window_bounds = array<i64: 1, 256>}, {transform_indices = @transform_2, window_bounds = array<i64: 8, 256>}]} {
    %c0 = arith.constant 0 : index
    %c0_0 = arith.constant 0 : index
    %0 = vector.load %arg2[%c0, %c0_0] : memref<8x256xf32, #tpu.memory_space<vmem>>, vector<8x256xf32>
    %c0_1 = arith.constant 0 : index
    %c0_2 = arith.constant 0 : index
    %1 = vector.load %arg3[%c0_1, %c0_2] : memref<1x256xf32, #tpu.memory_space<vmem>>, vector<1x256xf32>
    %2 = vector.broadcast %1 : vector<1x256xf32> to vector<8x256xf32>
    %3 = arith.mulf %0, %2 : vector<8x256xf32>
    %c0_3 = arith.constant 0 : index
    %c0_4 = arith.constant 0 : index
    %4 = vector.load %arg4[%c0_3, %c0_4] : memref<8x256xf32, #tpu.memory_space<vmem>>, vector<8x256xf32>
    tpu.vector_store %arg4[%c0_3, %c0_4], %3 {strides = array<i32>} : memref<8x256xf32, #tpu.memory_space<vmem>>, vector<8x256xf32>,
    return
  }
  func.func @transform_0(%arg0: i32, %arg1: i32) -> (i32, i32) {
    %c0_i32 = arith.constant 0 : i32
    return %arg0, %arg1 : i32, i32
  }
  func.func @transform_1(%arg0: i32, %arg1: i32) -> (i32, i32) {
    %c0_i32 = arith.constant 0 : i32
    %c0_i32_0 = arith.constant 0 : i32
    return %c0_i32, %arg1 : i32, i32
  }
  func.func @transform_2(%arg0: i32, %arg1: i32) -> (i32, i32) {
    %c0_i32 = arith.constant 0 : i32
    return %arg0, %arg1 : i32, i32
  }
}

module attributes {stable_mosaic.version = 11 : i64} {
  func.func @_locked_dropout_kernel(%arg0: i32, %arg1: i32, %arg2: memref<8x256xf32, #tpu.memory_space<vmem>>, %arg3: memref<1x256xf32, #tpu.memory_space<vmem>>, %arg4: memref<8x256xf32, #tpu.memory_space<vmem>>) attributes {dimension_semantics = [#tpu.dimension_semantics<parallel>, #tpu.dimension_semantics<parallel>], iteration_bounds = array<i64: 1, 1>, scalar_prefetch = 0 : i64, scratch_operands = 0 : i64, tpu.core_type = #tpu.core_type<tc>, window_params = [{transform_indices = @transform_0, window_bounds = array<i64: 8, 256>}, {transform_indices = @transform_1, window_bounds = array<i64: 1, 256>}, {transform_indices = @transform_2, window_bounds = array<i64: 8, 256>}]} {
    %c0 = arith.constant 0 : index
    %c0_0 = arith.constant 0 : index
    %0 = vector.load %arg2[%c0, %c0_0] : memref<8x256xf32, #tpu.memory_space<vmem>>, vector<8x256xf32>
    %c0_1 = arith.constant 0 : index
    %c0_2 = arith.constant 0 : index
    %1 = vector.load %arg3[%c0_1, %c0_2] : memref<1x256xf32, #tpu.memory_space<vmem>>, vector<1x256xf32>
    %2 = vector.broadcast %1 : vector<1x256xf32> to vector<8x256xf32>
    %3 = arith.mulf %0, %2 : vector<8x256xf32>
    %c0_3 = arith.constant 0 : index
    %c0_4 = arith.constant 0 : index
    %4 = vector.load %arg4[%c0_3, %c0_4] : memref<8x256xf32, #tpu.memory_space<vmem>>, vector<8x256xf32>
    tpu.vector_store %arg4[%c0_3, %c0_4], %3 {strides = array<i32>} : memref<8x256xf32, #tpu.memory_space<vmem>>, vector<8x256xf32>,
    return
  }
  func.func @transform_0(%arg0: i32, %arg1: i32) -> (i32, i32) {
    %c0_i32 = arith.constant 0 : i32
    return %arg0, %arg1 : i32, i32
  }
  func.func @transform_1(%arg0: i32, %arg1: i32) -> (i32, i32) {
    %c0_i32 = arith.constant 0 : i32
    %c0_i32_0 = arith.constant 0 : i32
    return %c0_i32, %arg1 : i32, i32
  }
  func.func @transform_2(%arg0: i32, %arg1: i32) -> (i32, i32) {
    %c0_i32 = arith.constant 0 : i32
    return %arg0, %arg1 : i32, i32
  }
}

</mosaic_0001>

<llo_original>
// kernel: tpu_custom_call.1
$region0: #{tpu_custom_call.1}
  #allocation0 [shape = 'u32[]', space=smem, size = 0x4, offset = 0x4, fixed_abs, tag = 'smem constant byte address 0x4 - core index']
  #allocation1 [shape = 'u32[72,128]{1,0:T(1,128)}', space=vmem, size = 0x9000, scoped, tag = 'internal scratch']
  %s0 = inlined_call_operand.hbm [shape: f32[8,256], index: 0, kind: input, shape index: {}]
  %s1 = inlined_call_operand.hbm [shape: f32[1,256], index: 1, kind: input, shape index: {}]
  %s2 = inlined_call_operand.hbm [shape: f32[8,256], index: 2, kind: output, shape index: {}]
  %s3 = sld [smem:[#allocation0]]
  $region26: #{tpu_custom_call.1} parent=0
    _
  %s5 = ssub.s32 1, %s3
  %s6 = scalar_select 0, %s5, %s3
  $region1: #{tpu_custom_call.1} parent=0
    #allocation2 [shape = 'u8[8192]{0}', space=vmem, size = 0x2000, scoped, tag = 'input window, operand 0, single buffered']
    #allocation3 [shape = 's32[1]{0}', space=sflag, size = 0x4, scoped, tag = 'scoped memory for tpu_custom_call.1']
    #allocation4 [shape = 's32[1]{0}', space=sflag, size = 0x4, scoped, tag = 'scoped memory for tpu_custom_call.1']
    #allocation5 [shape = 'u8[1024]{0}', space=vmem, size = 0x400, scoped, tag = 'input window, operand 1, single buffered']
    #allocation6 [shape = 's32[1]{0}', space=sflag, size = 0x4, scoped, tag = 'scoped memory for tpu_custom_call.1']
    #allocation7 [shape = 'u8[8192]{0}', space=vmem, size = 0x2000, scoped, tag = 'output window, operand 0, single buffered']
    %7 = vsyncpa [#allocation3], 0
    %8 = vsyncpa [#allocation6], 0
    %9 = vsyncpa [#allocation4], 0
    // Predicated region
    $region2: #{tpu_custom_call.1} parent=1 // pred_check
      _
    $region3: #{tpu_custom_call.1} parent=1 // pred_check_branch
      %11 = sbr.rel (0) target = $region5
    $region4: #{tpu_custom_call.1} parent=1 // pred_region
      %13 = vsyncadd [#allocation3], 0
      %s15 = sshll.u32 %s0, 4
      %s16 = int_to_ptr.hbm [resolvable:$true] %s15
      %s17 = sshll.u32 [#allocation2], 4
      %s18 = int_to_ptr.vmem [resolvable:$true] %s17
      %20 = dma.hbm_to_vmem [thread:$0]  %s16, 256, %s18, [#allocation3]
    $region5: #{tpu_custom_call.1} parent=1 // pred_fallthru
      _
    // Predicated region
    $region6: #{tpu_custom_call.1} parent=1 // pred_check
      _
    $region7: #{tpu_custom_call.1} parent=1 // pred_check_branch
      %22 = sbr.rel (0) target = $region9
    $region8: #{tpu_custom_call.1} parent=1 // pred_region
      %24 = vsyncadd [#allocation6], 0
      %s26 = sshll.u32 %s1, 4
      %s27 = int_to_ptr.hbm [resolvable:$true] %s26
      %s28 = sshll.u32 [#allocation5], 4
      %s29 = int_to_ptr.vmem [resolvable:$true] %s28
      %31 = dma.hbm_to_vmem [thread:$0]  %s27, 32, %s29, [#allocation6]
    $region9: #{tpu_custom_call.1} parent=1 // pred_fallthru
      _
    // Predicated region
    $region10: #{tpu_custom_call.1} parent=1 // pred_check
      _
    $region11: #{tpu_custom_call.1} parent=1 // pred_check_branch
      %33 = sbr.rel (0) target = $region13
    $region12: #{tpu_custom_call.1} parent=1 // pred_region
      %35 = dma.done [#allocation3], 256
    $region13: #{tpu_custom_call.1} parent=1 // pred_fallthru
      _
    // Predicated region
    $region14: #{tpu_custom_call.1} parent=1 // pred_check
      _
    $region15: #{tpu_custom_call.1} parent=1 // pred_check_branch
      %37 = sbr.rel (0) target = $region17
    $region16: #{tpu_custom_call.1} parent=1 // pred_region
      %39 = dma.done [#allocation6], 32
    $region17: #{tpu_custom_call.1} parent=1 // pred_fallthru
      _
    %v40 = vld [vmem:[#allocation2] sm:$0xff]
    %v41 = vld [vmem:[#allocation2 + $0x8] sm:$0xff]
    %v42 = vld [vmem:[#allocation5] sm:$0x3]
    %v44 = vperm.slane %v42, 0
    %v45 = vperm.slane %v42, 1
    %v48 = vmul.f32 %v40, %v44
    %v49 = vmul.f32 %v41, %v45
    %50 = vst [vmem:[#allocation7] sm:$0xff] %v48
    %51 = vst [vmem:[#allocation7 + $0x8] sm:$0xff] %v49
    // Predicated region
    $region18: #{tpu_custom_call.1} parent=1 // pred_check
      _
    $region19: #{tpu_custom_call.1} parent=1 // pred_check_branch
      %53 = sbr.rel (0) target = $region21
    $region20: #{tpu_custom_call.1} parent=1 // pred_region
      %55 = vsyncadd [#allocation4], 0
      %s57 = sshll.u32 [#allocation7], 4
      %s58 = int_to_ptr.vmem [resolvable:$true] %s57
      %s59 = sshll.u32 %s2, 4
      %s60 = int_to_ptr.hbm [resolvable:$true] %s59
      %62 = dma.vmem_to_hbm [thread:$0]  %s58, 256, %s60, [#allocation4]
    $region21: #{tpu_custom_call.1} parent=1 // pred_fallthru
      _
    // Predicated region
    $region22: #{tpu_custom_call.1} parent=1 // pred_check
      _
    $region23: #{tpu_custom_call.1} parent=1 // pred_check_branch
      %64 = sbr.rel (0) target = $region25
    $region24: #{tpu_custom_call.1} parent=1 // pred_region
      %66 = dma.done [#allocation4], 256
    $region25: #{tpu_custom_call.1} parent=1 // pred_fallthru
      _
    %67 = vsyncpa [#allocation3], 1
    %68 = vsyncpa [#allocation6], 1
    %69 = vsyncpa [#allocation4], 1

// kernel: tpu_custom_call.1
$region0: #{tpu_custom_call.1}
  #allocation0 [shape = 'u32[]', space=smem, size = 0x4, offset = 0x4, fixed_abs, tag = 'smem constant byte address 0x4 - core index']
  #allocation1 [shape = 'u32[72,128]{1,0:T(1,128)}', space=vmem, size = 0x9000, scoped, tag = 'internal scratch']
  %s0 = inlined_call_operand.hbm [shape: f32[8,256], index: 0, kind: input, shape index: {}]
  %s1 = inlined_call_operand.hbm [shape: f32[1,256], index: 1, kind: input, shape index: {}]
  %s2 = inlined_call_operand.hbm [shape: f32[8,256], index: 2, kind: output, shape index: {}]
  %s3 = sld [smem:[#allocation0]]
  $region26: #{tpu_custom_call.1} parent=0
    _
  %s5 = ssub.s32 1, %s3
  %s6 = scalar_select 0, %s5, %s3
  $region1: #{tpu_custom_call.1} parent=0
    #allocation2 [shape = 'u8[8192]{0}', space=vmem, size = 0x2000, scoped, tag = 'input window, operand 0, single buffered']
    #allocation3 [shape = 's32[1]{0}', space=sflag, size = 0x4, scoped, tag = 'scoped memory for tpu_custom_call.1']
    #allocation4 [shape = 's32[1]{0}', space=sflag, size = 0x4, scoped, tag = 'scoped memory for tpu_custom_call.1']
    #allocation5 [shape = 'u8[1024]{0}', space=vmem, size = 0x400, scoped, tag = 'input window, operand 1, single buffered']
    #allocation6 [shape = 's32[1]{0}', space=sflag, size = 0x4, scoped, tag = 'scoped memory for tpu_custom_call.1']
    #allocation7 [shape = 'u8[8192]{0}', space=vmem, size = 0x2000, scoped, tag = 'output window, operand 0, single buffered']
    %7 = vsyncpa [#allocation3], 0
    %8 = vsyncpa [#allocation6], 0
    %9 = vsyncpa [#allocation4], 0
    // Predicated region
    $region2: #{tpu_custom_call.1} parent=1 // pred_check
      _
    $region3: #{tpu_custom_call.1} parent=1 // pred_check_branch
      %11 = sbr.rel (0) target = $region5
    $region4: #{tpu_custom_call.1} parent=1 // pred_region
      %13 = vsyncadd [#allocation3], 0
      %s15 = sshll.u32 %s0, 4
      %s16 = int_to_ptr.hbm [resolvable:$true] %s15
      %s17 = sshll.u32 [#allocation2], 4
      %s18 = int_to_ptr.vmem [resolvable:$true] %s17
      %20 = dma.hbm_to_vmem [thread:$0]  %s16, 256, %s18, [#allocation3]
    $region5: #{tpu_custom_call.1} parent=1 // pred_fallthru
      _
    // Predicated region
    $region6: #{tpu_custom_call.1} parent=1 // pred_check
      _
    $region7: #{tpu_custom_call.1} parent=1 // pred_check_branch
      %22 = sbr.rel (0) target = $region9
    $region8: #{tpu_custom_call.1} parent=1 // pred_region
      %24 = vsyncadd [#allocation6], 0
      %s26 = sshll.u32 %s1, 4
      %s27 = int_to_ptr.hbm [resolvable:$true] %s26
      %s28 = sshll.u32 [#allocation5], 4
      %s29 = int_to_ptr.vmem [resolvable:$true] %s28
      %31 = dma.hbm_to_vmem [thread:$0]  %s27, 32, %s29, [#allocation6]
    $region9: #{tpu_custom_call.1} parent=1 // pred_fallthru
      _
    // Predicated region
    $region10: #{tpu_custom_call.1} parent=1 // pred_check
      _
    $region11: #{tpu_custom_call.1} parent=1 // pred_check_branch
      %33 = sbr.rel (0) target = $region13
    $region12: #{tpu_custom_call.1} parent=1 // pred_region
      %35 = dma.done [#allocation3], 256
    $region13: #{tpu_custom_call.1} parent=1 // pred_fallthru
      _
    // Predicated region
    $region14: #{tpu_custom_call.1} parent=1 // pred_check
      _
    $region15: #{tpu_custom_call.1} parent=1 // pred_check_branch
      %37 = sbr.rel (0) target = $region17
    $region16: #{tpu_custom_call.1} parent=1 // pred_region
      %39 = dma.done [#allocation6], 32
    $region17: #{tpu_custom_call.1} parent=1 // pred_fallthru
      _
    %v40 = vld [vmem:[#allocation2] sm:$0xff]
    %v41 = vld [vmem:[#allocation2 + $0x8] sm:$0xff]
    %v42 = vld [vmem:[#allocation5] sm:$0x3]
    %v44 = vperm.slane %v42, 0
    %v45 = vperm.slane %v42, 1
    %v48 = vmul.f32 %v40, %v44
    %v49 = vmul.f32 %v41, %v45
    %50 = vst [vmem:[#allocation7] sm:$0xff] %v48
    %51 = vst [vmem:[#allocation7 + $0x8] sm:$0xff] %v49
    // Predicated region
    $region18: #{tpu_custom_call.1} parent=1 // pred_check
      _
    $region19: #{tpu_custom_call.1} parent=1 // pred_check_branch
      %53 = sbr.rel (0) target = $region21
    $region20: #{tpu_custom_call.1} parent=1 // pred_region
      %55 = vsyncadd [#allocation4], 0
      %s57 = sshll.u32 [#allocation7], 4
      %s58 = int_to_ptr.vmem [resolvable:$true] %s57
      %s59 = sshll.u32 %s2, 4
      %s60 = int_to_ptr.hbm [resolvable:$true] %s59
      %62 = dma.vmem_to_hbm [thread:$0]  %s58, 256, %s60, [#allocation4]
    $region21: #{tpu_custom_call.1} parent=1 // pred_fallthru
      _
    // Predicated region
    $region22: #{tpu_custom_call.1} parent=1 // pred_check
      _
    $region23: #{tpu_custom_call.1} parent=1 // pred_check_branch
      %64 = sbr.rel (0) target = $region25
    $region24: #{tpu_custom_call.1} parent=1 // pred_region
      %66 = dma.done [#allocation4], 256
    $region25: #{tpu_custom_call.1} parent=1 // pred_fallthru
      _
    %67 = vsyncpa [#allocation3], 1
    %68 = vsyncpa [#allocation6], 1
    %69 = vsyncpa [#allocation4], 1

</llo_original>
